<compile_context>
chip_gen: v5e
topology: v5e:2x2
jax: 0.10.0
libtpu: 0.0.40
codegen_flags: <defaults>
</compile_context>

<pallas_src>
import functools
import math

import jax
import jax.numpy as jnp
from jax.experimental import pallas as pl
from jax.experimental.pallas import tpu as pltpu


_VMEM_LIMIT = 32 * 1024 * 1024          # safe on v5e/v6e (128 MiB) and v7x (64 MiB)
_FUSED_VMEM_BUDGET = 20 * 1024 * 1024   # gate for the fused resident-slab path
_ROW_TILE_TARGET = 2 * 1024 * 1024      # ~2 MiB input blocks for streaming passes


def _pick_row_tile(total_rows, row_bytes, target_bytes=_ROW_TILE_TARGET):
    """Largest multiple-of-8 divisor of `total_rows` whose block stays under
    `target_bytes`; never returns an over-budget full-extent block."""
    if total_rows * row_bytes <= target_bytes:
        return total_rows
    target = max(8, target_bytes // max(1, row_bytes))
    t = (target // 8) * 8
    while t >= 8:
        if total_rows % t == 0:
            return t
        t -= 8
    # No multiple-of-8 divisor under the target: any divisor keeps blocks small
    # and preserves pipelining (just with more grid steps).
    for t in range(int(min(target, total_rows)), 0, -1):
        if total_rows % t == 0:
            return t
    return 1


def _fold_lane_groups(row, p, d):
    """(1, p*d) -> (1, d): sum the p lane groups using static lane slices."""
    acc = row[:, 0:d]
    for i in range(1, p):
        acc = acc + row[:, i * d:(i + 1) * d]
    return acc


# --------------------------- fused (resident slab) ---------------------------

def _fused_kernel(x_ref, wt_ref, b_ref, o_ref, *, inv_r, p):
    """grid = (B,). Whole lane-dense (Q, P*D) batch slab resident in VMEM:
    column reduce -> tiny (1,D)x(D,D) matmul -> broadcast blend -> store."""
    x = x_ref[...]                                             # (Q, P*D), native dtype
    q, pd = x.shape
    d_in = wt_ref.shape[0]

    xf = x.astype(jnp.float32)
    if q % 8 == 0 and q > 8:
        part = xf.reshape(q // 8, 8, pd).sum(axis=0)           # pure VPU adds
        col = part.sum(axis=0, keepdims=True)                  # one sublane collapse
    else:
        col = jnp.sum(xf, axis=0, keepdims=True)               # (1, P*D)

    mean = _fold_lane_groups(col, p, d_in) * inv_r             # (1, D_in)
    c = jnp.dot(mean, wt_ref[...].astype(jnp.float32),
                preferred_element_type=jnp.float32)            # (1, D_out)
    c_half = (c + b_ref[...].astype(jnp.float32)) * 0.5
    c_ld = jnp.concatenate([c_half] * p, axis=-1).astype(x.dtype)   # (1, P*D)

    o_ref[...] = (x * 0.5 + c_ld).astype(o_ref.dtype)


# ------------------------- streaming fallback kernels ------------------------

def _reduce_kernel(x_ref, m_ref, acc_ref, *, inv_r, p):
    """grid = (B, Q//TQ1), reduction axis last ("arbitrary").
    Accumulates into an (acc_rows, P*D) f32 scratch with pure VPU adds; the
    cross-sublane collapse and lane-group fold run once, at the final step."""
    t = pl.program_id(1)

    @pl.when(t == 0)
    def _init():
        acc_ref[...] = jnp.zeros_like(acc_ref)

    xf = x_ref[...].astype(jnp.float32)                        # (TQ1, P*D)
    rows, pd = xf.shape
    acc_rows = acc_ref.shape[0]
    acc_ref[...] += xf.reshape(rows // acc_rows, acc_rows, pd).sum(axis=0)

    @pl.when(t == pl.num_programs(1) - 1)
    def _finalize():
        col = acc_ref[...].sum(axis=0, keepdims=True)          # (1, P*D)
        m_ref[...] = _fold_lane_groups(col, p, pd // p) * inv_r


def _blend_kernel(x_ref, c_ref, o_ref):
    """grid = (B, Q//TQ2): lane-dense mem-bound blend in native dtype."""
    o_ref[...] = (x_ref[...] * 0.5 + c_ref[...]).astype(o_ref.dtype)


# --------------------------------- wrapper -----------------------------------

def sender_aggregation(x, weight, bias, *, force_streaming=False):
    """x: (B, N, M, D_in); weight: (D_out, D_in) (PyTorch layout); bias: (D_out,)."""
    B, N, M, D_in = x.shape
    D_out, D_in_w = weight.shape
    assert D_in_w == D_in
    assert D_in == D_out, "residual blend requires in_dim == out_dim"
    R = N * M
    itemsize = jnp.dtype(x.dtype).itemsize

    # Lane-dense packing: fold P consecutive rows into the lane axis so every
    # kernel's last dim is a multiple of 128 (unmasked vector stores).
    P = 128 // math.gcd(128, D_in)
    if R % P != 0:
        # TODO(synk): split R into a P-divisible main region + small remainder
        # call to keep lane-dense stores for awkward R; P=1 stays correct.
        P = 1
    Q = R // P
    PD = P * D_in

    x_ld = x.reshape(B, Q, PD)                  # lane-dense per-batch view
    w_t = jnp.transpose(weight)                 # (D_in, D_out): no in-kernel transpose
    bias2d = bias.reshape(1, D_out)
    inv_r = 1.0 / float(R)

    slab = Q * PD * itemsize                    # per-batch x / out slab (native dtype)
    f32_slab = Q * PD * 4
    w_bytes = D_in * D_out * jnp.dtype(weight.dtype).itemsize
    # 2x in + 2x out pipeline buffers + f32 intermediates headroom + params.
    fused_est = 4 * slab + 4 * f32_slab + 2 * (w_bytes + D_out * 4)
    use_fused = (not force_streaming) and fused_est <= _FUSED_VMEM_BUDGET

    if use_fused:
        out_ld = pl.pallas_call(
            functools.partial(_fused_kernel, inv_r=inv_r, p=P),
            out_shape=jax.ShapeDtypeStruct((B, Q, PD), x.dtype),
            grid_spec=pltpu.PrefetchScalarGridSpec(
                num_scalar_prefetch=0,
                grid=(B,),
                in_specs=[
                    pl.BlockSpec((None, Q, PD), lambda b: (b, 0, 0)),
                    pl.BlockSpec((D_in, D_out), lambda b: (0, 0)),
                    pl.BlockSpec((1, D_out), lambda b: (0, 0)),
                ],
                out_specs=pl.BlockSpec((None, Q, PD), lambda b: (b, 0, 0)),
            ),
            compiler_params=pltpu.CompilerParams(
                dimension_semantics=("parallel",),
                vmem_limit_bytes=_VMEM_LIMIT),
            cost_estimate=pl.CostEstimate(
                flops=2 * B * (R * D_in + D_in * D_out),
                transcendentals=0,
                bytes_accessed=2 * x.size * itemsize + w_bytes),
        )(x_ld, w_t, bias2d)
        return out_ld.reshape(B, N, M, D_in)

    # ----- streaming fallback: reduce pass, XLA matmul, blend pass -----
    row_bytes = PD * itemsize
    tq1 = _pick_row_tile(Q, row_bytes)
    tq2 = _pick_row_tile(Q, row_bytes)
    acc_rows = 8 if tq1 % 8 == 0 else 1

    mean = pl.pallas_call(
        functools.partial(_reduce_kernel, inv_r=inv_r, p=P),
        out_shape=jax.ShapeDtypeStruct((B, 1, D_in), jnp.float32),
        grid_spec=pltpu.PrefetchScalarGridSpec(
            num_scalar_prefetch=0,
            grid=(B, Q // tq1),
            in_specs=[pl.BlockSpec((None, tq1, PD), lambda b, t: (b, t, 0))],
            out_specs=pl.BlockSpec((None, 1, D_in), lambda b, t: (b, 0, 0)),
            scratch_shapes=[pltpu.VMEM((acc_rows, PD), jnp.float32)],
        ),
        compiler_params=pltpu.CompilerParams(
            dimension_semantics=("parallel", "arbitrary"),
            vmem_limit_bytes=_VMEM_LIMIT),
        cost_estimate=pl.CostEstimate(
            flops=B * R * D_in, transcendentals=0,
            bytes_accessed=x.size * itemsize),
    )(x_ld)

    # Weight never enters the streaming kernels: one M=B matmul in XLA.
    c_half = 0.5 * (jnp.dot(mean.reshape(B, D_in), w_t.astype(jnp.float32),
                            preferred_element_type=jnp.float32)
                    + bias.astype(jnp.float32))                      # (B, D_out)
    c_ld = jnp.tile(c_half, (1, P)).reshape(B, 1, PD).astype(x.dtype)

    out_ld = pl.pallas_call(
        _blend_kernel,
        out_shape=jax.ShapeDtypeStruct((B, Q, PD), x.dtype),
        grid_spec=pltpu.PrefetchScalarGridSpec(
            num_scalar_prefetch=0,
            grid=(B, Q // tq2),
            in_specs=[
                pl.BlockSpec((None, tq2, PD), lambda b, t: (b, t, 0)),
                pl.BlockSpec((None, 1, PD), lambda b, t: (b, 0, 0)),
            ],
            out_specs=pl.BlockSpec((None, tq2, PD), lambda b, t: (b, t, 0)),
        ),
        compiler_params=pltpu.CompilerParams(
            dimension_semantics=("parallel", "parallel"),
            vmem_limit_bytes=_VMEM_LIMIT),
        cost_estimate=pl.CostEstimate(
            flops=2 * B * R * D_in, transcendentals=0,
            bytes_accessed=2 * x.size * itemsize),
    )(x_ld, c_ld)

    return out_ld.reshape(B, N, M, D_in)


def _reference(x, weight, bias):
    y = jnp.einsum("bnmi,oi->bnmo", x, weight) + bias
    Bm = jnp.mean(y, axis=2, keepdims=True)
    C = jnp.mean(Bm, axis=1, keepdims=True)
    return 0.5 * x + 0.5 * C


if __name__ == "__main__":
    key = jax.random.PRNGKey(0)
    k_x, k_w, k_b = jax.random.split(key, 3)

    batch, N, M, dim = 2, 4, 4, 32          # in_dim == out_dim == 32
    x = jax.random.normal(k_x, (batch, N, M, dim), dtype=jnp.float32)

    # deterministic "Linear(in_dim, out_dim)" parameters (synthetic init)
    bound = 1.0 / (dim ** 0.5)
    weight = jax.random.uniform(k_w, (dim, dim), jnp.float32, -bound, bound)
    bias = jax.random.uniform(k_b, (dim,), jnp.float32, -bound, bound)

    ref = _reference(x, weight, bias)

    out_fused = jax.block_until_ready(sender_aggregation(x, weight, bias))
    assert jnp.allclose(out_fused, ref, atol=1e-5, rtol=1e-5), "fused path mismatch"

    out_stream = jax.block_until_ready(
        sender_aggregation(x, weight, bias, force_streaming=True))
    assert jnp.allclose(out_stream, ref, atol=1e-5, rtol=1e-5), "streaming path mismatch"

    print("KERNEL_OK")
</pallas_src>

<mosaic_0001>
module attributes {stable_mosaic.version = 11 : i64} {
  func.func @_fused_kernel(%arg0: i32, %arg1: memref<1x4x128xf32, #tpu.memory_space<vmem>>, %arg2: memref<32x32xf32, #tpu.memory_space<vmem>>, %arg3: memref<1x32xf32, #tpu.memory_space<vmem>>, %arg4: memref<1x4x128xf32, #tpu.memory_space<vmem>>) attributes {dimension_semantics = [#tpu.dimension_semantics<parallel>], iteration_bounds = array<i64: 2>, scalar_prefetch = 0 : i64, scratch_operands = 0 : i64, tpu.core_type = #tpu.core_type<tc>, window_params = [{transform_indices = @transform_0, window_bounds = array<i64: 1, 4, 128>}, {pipeline_mode = #tpu.pipeline_mode<synchronous>, transform_indices = @transform_1, window_bounds = array<i64: 32, 32>}, {pipeline_mode = #tpu.pipeline_mode<synchronous>, transform_indices = @transform_2, window_bounds = array<i64: 1, 32>}, {transform_indices = @transform_3, window_bounds = array<i64: 1, 4, 128>}]} {
    %c0 = arith.constant 0 : index
    %c0_0 = arith.constant 0 : index
    %c0_1 = arith.constant 0 : index
    %0 = vector.load %arg1[%c0, %c0_0, %c0_1] : memref<1x4x128xf32, #tpu.memory_space<vmem>>, vector<1x4x128xf32>
    %1 = vector.shape_cast %0 : vector<1x4x128xf32> to vector<4x128xf32>
    %cst = arith.constant dense<0.000000e+00> : vector<128xf32>
    %2 = vector.multi_reduction <add>, %1, %cst [0] : vector<4x128xf32> to vector<128xf32>
    %3 = vector.shape_cast %2 : vector<128xf32> to vector<1x128xf32>
    %4 = vector.extract_strided_slice %3 {offsets = [0, 0], sizes = [1, 32], strides = [1, 1]} : vector<1x128xf32> to vector<1x32xf32>
    %5 = vector.extract_strided_slice %3 {offsets = [0, 32], sizes = [1, 32], strides = [1, 1]} : vector<1x128xf32> to vector<1x32xf32>
    %6 = arith.addf %4, %5 : vector<1x32xf32>
    %7 = vector.extract_strided_slice %3 {offsets = [0, 64], sizes = [1, 32], strides = [1, 1]} : vector<1x128xf32> to vector<1x32xf32>
    %8 = arith.addf %6, %7 : vector<1x32xf32>
    %9 = vector.extract_strided_slice %3 {offsets = [0, 96], sizes = [1, 32], strides = [1, 1]} : vector<1x128xf32> to vector<1x32xf32>
    %10 = arith.addf %8, %9 : vector<1x32xf32>
    %cst_2 = arith.constant 6.250000e-02 : f32
    %11 = vector.broadcast %cst_2 : f32 to vector<1x32xf32>
    %12 = arith.mulf %10, %11 : vector<1x32xf32>
    %c0_3 = arith.constant 0 : index
    %c0_4 = arith.constant 0 : index
    %13 = vector.load %arg2[%c0_3, %c0_4] : memref<32x32xf32, #tpu.memory_space<vmem>>, vector<32x32xf32>
    %cst_5 = arith.constant dense<0.000000e+00> : vector<1x32xf32>
    %14 = tpu.matmul %12, %13, %cst_5 {dimension_numbers = #tpu.dot_dimension_numbers<[1], [0], [0], [1], [0, 0, 1, 1], [], []>} : vector<1x32xf32>, vector<32x32xf32>, vector<1x32xf32> -> vector<1x32xf32>
    %c0_6 = arith.constant 0 : index
    %c0_7 = arith.constant 0 : index
    %15 = vector.load %arg3[%c0_6, %c0_7] : memref<1x32xf32, #tpu.memory_space<vmem>>, vector<1x32xf32>
    %16 = arith.addf %14, %15 : vector<1x32xf32>
    %cst_8 = arith.constant 5.000000e-01 : f32
    %17 = vector.broadcast %cst_8 : f32 to vector<1x32xf32>
    %18 = arith.mulf %16, %17 : vector<1x32xf32>
    %19 = tpu.concatenate %18, %18, %18, %18 in 1 : vector<1x32xf32>, vector<1x32xf32>, vector<1x32xf32>, vector<1x32xf32> -> vector<1x128xf32>
    %cst_9 = arith.constant 5.000000e-01 : f32
    %20 = vector.broadcast %cst_9 : f32 to vector<4x128xf32>
    %21 = arith.mulf %1, %20 : vector<4x128xf32>
    %22 = vector.broadcast %19 : vector<1x128xf32> to vector<4x128xf32>
    %23 = arith.addf %21, %22 : vector<4x128xf32>
    %c0_10 = arith.constant 0 : index
    %c0_11 = arith.constant 0 : index
    %c0_12 = arith.constant 0 : index
    %24 = vector.load %arg4[%c0_10, %c0_11, %c0_12] : memref<1x4x128xf32, #tpu.memory_space<vmem>>, vector<1x4x128xf32>
    %25 = vector.shape_cast %24 : vector<1x4x128xf32> to vector<4x128xf32>
    %26 = vector.shape_cast %23 : vector<4x128xf32> to vector<1x4x128xf32>
    tpu.vector_store %arg4[%c0_10, %c0_11, %c0_12], %26 {strides = array<i32>} : memref<1x4x128xf32, #tpu.memory_space<vmem>>, vector<1x4x128xf32>,
    return
  }
  func.func @transform_0(%arg0: i32) -> (i32, i32, i32) {
    %c0_i32 = arith.constant 0 : i32
    %c0_i32_0 = arith.constant 0 : i32
    %c0_i32_1 = arith.constant 0 : i32
    return %arg0, %c0_i32, %c0_i32_0 : i32, i32, i32
  }
  func.func @transform_1(%arg0: i32) -> (i32, i32) {
    %c0_i32 = arith.constant 0 : i32
    %c0_i32_0 = arith.constant 0 : i32
    %c0_i32_1 = arith.constant 0 : i32
    return %c0_i32, %c0_i32_0 : i32, i32
  }
  func.func @transform_2(%arg0: i32) -> (i32, i32) {
    %c0_i32 = arith.constant 0 : i32
    %c0_i32_0 = arith.constant 0 : i32
    %c0_i32_1 = arith.constant 0 : i32
    return %c0_i32, %c0_i32_0 : i32, i32
  }
  func.func @transform_3(%arg0: i32) -> (i32, i32, i32) {
    %c0_i32 = arith.constant 0 : i32
    %c0_i32_0 = arith.constant 0 : i32
    %c0_i32_1 = arith.constant 0 : i32
    return %arg0, %c0_i32, %c0_i32_0 : i32, i32, i32
  }
}

</mosaic_0001>

<llo_original>
// kernel: tpu_custom_call.1
$region0: #{tpu_custom_call.1}
  #allocation0 [shape = 'u32[]', space=smem, size = 0x4, offset = 0x4, fixed_abs, tag = 'smem constant byte address 0x4 - core index']
  #allocation1 [shape = 'u32[72,128]{1,0:T(1,128)}', space=vmem, size = 0x9000, scoped, tag = 'internal scratch']
  %s0 = inlined_call_operand.hbm [shape: f32[2,4,128], index: 0, kind: input, shape index: {}]
  %s1 = inlined_call_operand.hbm [shape: f32[32,32], index: 1, kind: input, shape index: {}]
  %s2 = inlined_call_operand.vmem [shape: f32[1,32], index: 2, kind: input, shape index: {}]
  %s3 = inlined_call_operand.hbm [shape: f32[2,4,128], index: 3, kind: output, shape index: {}]
  %s4 = sld [smem:[#allocation0]]
  $region53: #{tpu_custom_call.1} parent=0
    _
  %s6 = ssub.s32 1, %s4
  %s7 = scalar_select 0, %s6, %s4
  $region1: #{tpu_custom_call.1} parent=0
    #allocation2 [shape = 'u8[4096]{0}', space=vmem, size = 0x1000, scoped, tag = 'input window, operand 0']
    #allocation3 [shape = 's32[2]{0}', space=sflag, size = 0x8, scoped, tag = 'scoped memory for tpu_custom_call.1']
    #allocation4 [shape = 's32[2]{0}', space=sflag, size = 0x8, scoped, tag = 'scoped memory for tpu_custom_call.1']
    #allocation5 [shape = 'u8[16384]{0}', space=vmem, size = 0x4000, scoped, tag = 'input window, operand 1, single buffered']
    #allocation6 [shape = 's32[1]{0}', space=sflag, size = 0x4, scoped, tag = 'scoped memory for tpu_custom_call.1']
    #allocation7 [shape = 'u8[4096]{0}', space=vmem, size = 0x1000, scoped, tag = 'output window, operand 0']
    %8 = vsyncpa [#allocation3], 0
    %s9 = scalar_lea.sflag [#allocation3], 1
    %10 = vsyncpa %s9, 0
    %11 = vsyncpa [#allocation6], 0
    %12 = vsyncpa [#allocation4], 0
    %s13 = scalar_lea.sflag [#allocation4], 1
    %14 = vsyncpa %s13, 0
    loop: start=0, step=1, limit=4
    $region2: #{tpu_custom_call.1} parent=1 // loop_pre_header
      _
    $region3: #{tpu_custom_call.1} parent=1 // loop_header
      %s16 = sphi 0, %s20
      %p17 = scmp.ge.s32.totalorder %s16, 4
      %s26 = sphi 0, %s28
      %s29 = sphi 0, %s26
      %s30 = sphi 0, %s29
      %s46 = sphi 0, %s30
      %s50 = sphi 0, %s50
      %s52 = sphi 0, %s50
      %s53 = sphi 0, %s52
      %s67 = sphi 0, %s53
      %s71 = sphi 0, %s71
      %s73 = sphi 0, %s71
      %s74 = sphi 0, %s73
      %s88 = sphi 0, %s74
      %s94 = sphi 0, %s96
      %s97 = sphi 0, %s94
      %s98 = sphi 0, %s97
      %s114 = sphi 0, %s98
    $region4: #{tpu_custom_call.1} parent=1 // loop_header_branch
      %19 = sbr.rel (%p17) target = $region8
    $region5: #{tpu_custom_call.1} parent=1 // loop_body
      %s21 = ssub.s32 %s16, 1
      %s22 = ssub.s32 %s16, 2
      %s23 = sadd.s32 %s16, 1
      %s24 = ssub.s32 %s16, %s23
      %p25 = scmp.eq.s32.totalorder %s24, 0
      %s27 = sadd.s32 %s26, 1
      %s28 = scalar_select %p25, %s26, %s27
      %p31 = pneg %p25
      %p32 = scmp.eq.s32.totalorder %s16, 1
      %p33 = por %p31, %p32
      %p34 = scmp.ne.s32.totalorder %s26, %s29
      %p35 = scmp.eq.s32.totalorder %s16, 0
      %p36 = por %p34, %p35
      %p37 = scmp.ne.s32.totalorder %s26, %s29
      %p38 = scmp.eq.s32.totalorder %s21, 1
      %p39 = por %p37, %p38
      %p40 = scmp.ne.s32.totalorder %s29, %s30
      %p41 = scmp.eq.s32.totalorder %s21, 0
      %p42 = por %p40, %p41
      %p43 = scmp.ne.s32.totalorder %s29, %s30
      %p44 = scmp.eq.s32.totalorder %s22, 1
      %p45 = por %p43, %p44
      %p47 = scmp.ne.s32.totalorder %s30, %s46
      %p48 = scmp.eq.s32.totalorder %s22, 0
      %p49 = por %p47, %p48
      %s51 = sadd.s32 %s50, 1
      %p54 = scmp.eq.s32.totalorder %s16, 1
      %p55 = scmp.ne.s32.totalorder %s50, %s52
      %p56 = scmp.eq.s32.totalorder %s16, 0
      %p57 = por %p55, %p56
      %p58 = scmp.ne.s32.totalorder %s50, %s52
      %p59 = scmp.eq.s32.totalorder %s21, 1
      %p60 = por %p58, %p59
      %p61 = scmp.ne.s32.totalorder %s52, %s53
      %p62 = scmp.eq.s32.totalorder %s21, 0
      %p63 = por %p61, %p62
      %p64 = scmp.ne.s32.totalorder %s52, %s53
      %p65 = scmp.eq.s32.totalorder %s22, 1
      %p66 = por %p64, %p65
      %p68 = scmp.ne.s32.totalorder %s53, %s67
      %p69 = scmp.eq.s32.totalorder %s22, 0
      %p70 = por %p68, %p69
      %s72 = sadd.s32 %s71, 1
      %p75 = scmp.eq.s32.totalorder %s16, 1
      %p76 = scmp.ne.s32.totalorder %s71, %s73
      %p77 = scmp.eq.s32.totalorder %s16, 0
      %p78 = por %p76, %p77
      %p79 = scmp.ne.s32.totalorder %s71, %s73
      %p80 = scmp.eq.s32.totalorder %s21, 1
      %p81 = por %p79, %p80
      %p82 = scmp.ne.s32.totalorder %s73, %s74
      %p83 = scmp.eq.s32.totalorder %s21, 0
      %p84 = por %p82, %p83
      %p85 = scmp.ne.s32.totalorder %s73, %s74
      %p86 = scmp.eq.s32.totalorder %s22, 1
      %p87 = por %p85, %p86
      %p89 = scmp.ne.s32.totalorder %s74, %s88
      %p90 = scmp.eq.s32.totalorder %s22, 0
      %p91 = por %p89, %p90
      %s92 = ssub.s32 %s16, %s23
      %p93 = scmp.eq.s32.totalorder %s92, 0
      %s95 = sadd.s32 %s94, 1
      %s96 = scalar_select %p93, %s94, %s95
      %p99 = pneg %p93
      %p100 = scmp.eq.s32.totalorder %s16, 1
      %p101 = por %p99, %p100
      %p102 = scmp.ne.s32.totalorder %s94, %s97
      %p103 = scmp.eq.s32.totalorder %s16, 0
      %p104 = por %p102, %p103
      %p105 = scmp.ne.s32.totalorder %s94, %s97
      %p106 = scmp.eq.s32.totalorder %s21, 1
      %p107 = por %p105, %p106
      %p108 = scmp.ne.s32.totalorder %s97, %s98
      %p109 = scmp.eq.s32.totalorder %s21, 0
      %p110 = por %p108, %p109
      %p111 = scmp.ne.s32.totalorder %s97, %s98
      %p112 = scmp.eq.s32.totalorder %s22, 1
      %p113 = por %p111, %p112
      %p115 = scmp.ne.s32.totalorder %s98, %s114
      %p116 = scmp.eq.s32.totalorder %s22, 0
      %p117 = por %p115, %p116
      %p118 = scmp.le.s32.totalorder 1, %s16
      %p119 = scmp.lt.s32.totalorder %s16, 3
      %p120 = pnand %p118, %p119
      %p121 = pneg %p120
      // Predicated region
      $region9: #{tpu_custom_call.1} parent=5 // pred_check
        _
      $region10: #{tpu_custom_call.1} parent=5 // pred_check_branch
        %123 = sbr.rel (%p120) target = $region12
      $region11: #{tpu_custom_call.1} parent=5 // pred_region
        %s124 = ssub.s32 %s16, 1
        // Predicated region
        $region13: #{tpu_custom_call.1} parent=11 // pred_check
          %p125 = pneg %p63
        $region14: #{tpu_custom_call.1} parent=11 // pred_check_branch
          %127 = sbr.rel (%p125) target = $region16
        $region15: #{tpu_custom_call.1} parent=11 // pred_region
          %129 = vsyncadd [#allocation6], 0
          %s130 = sshll.u32 %s1, 4
          %s131 = int_to_ptr.hbm [resolvable:$true] %s130
          %s132 = sshll.u32 [#allocation5], 4
          %s133 = int_to_ptr.vmem [resolvable:$true] %s132
          %138 = dma.hbm_to_vmem [thread:$0]  %s131, 512, %s133, [#allocation6], 128, 128, 8
        $region16: #{tpu_custom_call.1} parent=11 // pred_fallthru
          _
        // Predicated region
        $region17: #{tpu_custom_call.1} parent=11 // pred_check
          %p139 = pneg %p84
        $region18: #{tpu_custom_call.1} parent=11 // pred_check_branch
          %141 = sbr.rel (%p139) target = $region20
        $region19: #{tpu_custom_call.1} parent=11 // pred_region
          _
        $region20: #{tpu_custom_call.1} parent=11 // pred_fallthru
          _
      $region12: #{tpu_custom_call.1} parent=5 // pred_fallthru
        _
      %p142 = scmp.lt.s32.totalorder %s16, 2
      // Predicated region
      $region21: #{tpu_custom_call.1} parent=5 // pred_check
        %p143 = pneg %p142
      $region22: #{tpu_custom_call.1} parent=5 // pred_check_branch
        %145 = sbr.rel (%p143) target = $region24
      $region23: #{tpu_custom_call.1} parent=5 // pred_region
        // Predicated region
        $region25: #{tpu_custom_call.1} parent=23 // pred_check
          %p146 = pneg %p36
        $region26: #{tpu_custom_call.1} parent=23 // pred_check_branch
          %148 = sbr.rel (%p146) target = $region28
        $region27: #{tpu_custom_call.1} parent=23 // pred_region
          %s149 = sand.u32 %s26, 1
          %s150 = scalar_lea.sflag [#allocation3], %s149
          %s151 = sand.u32 %s26, 1
          %s152 = smul.addr %s151, 4
          %s153 = scalar_lea.vmem [#allocation2], %s152
          %155 = vsyncadd %s150, 0
          %s156 = smul.addr %s16, 4
          %s157 = scalar_lea.hbm %s0, %s156
          %s159 = sshll.u32 %s157, 4
          %s160 = int_to_ptr.hbm [resolvable:$true] %s159
          %s161 = sshll.u32 %s153, 4
          %s162 = int_to_ptr.vmem [resolvable:$true] %s161
          %164 = dma.hbm_to_vmem [thread:$0]  %s160, 64, %s162, %s150
        $region28: #{tpu_custom_call.1} parent=23 // pred_fallthru
          _
      $region24: #{tpu_custom_call.1} parent=5 // pred_fallthru
        _
      %p165 = scmp.le.s32.totalorder 1, %s16
      %p166 = scmp.lt.s32.totalorder %s16, 3
      %p167 = pnand %p165, %p166
      %p168 = pneg %p167
      // Predicated region
      $region29: #{tpu_custom_call.1} parent=5 // pred_check
        _
      $region30: #{tpu_custom_call.1} parent=5 // pred_check_branch
        %170 = sbr.rel (%p167) target = $region32
      $region31: #{tpu_custom_call.1} parent=5 // pred_region
        %s171 = ssub.s32 %s16, 1
        %s172 = sand.u32 %s29, 1
        %s173 = scalar_lea.sflag [#allocation3], %s172
        %s174 = sand.u32 %s29, 1
        %s175 = smul.addr %s174, 4
        %s176 = scalar_lea.vmem [#allocation2], %s175
        // Predicated region
        $region33: #{tpu_custom_call.1} parent=31 // pred_check
          %p177 = pneg %p42
        $region34: #{tpu_custom_call.1} parent=31 // pred_check_branch
          %179 = sbr.rel (%p177) target = $region36
        $region35: #{tpu_custom_call.1} parent=31 // pred_region
          %181 = dma.done %s173, 64
        $region36: #{tpu_custom_call.1} parent=31 // pred_fallthru
          _
        // Predicated region
        $region37: #{tpu_custom_call.1} parent=31 // pred_check
          %p182 = pneg %p63
        $region38: #{tpu_custom_call.1} parent=31 // pred_check_branch
          %184 = sbr.rel (%p182) target = $region40
        $region39: #{tpu_custom_call.1} parent=31 // pred_region
          %186 = dma.done [#allocation6], 512
        $region40: #{tpu_custom_call.1} parent=31 // pred_fallthru
          _
        %s187 = sand.u32 %s29, 1
        %s188 = scalar_lea.sflag [#allocation3], %s187
        %s189 = sand.u32 %s29, 1
        %s190 = smul.addr %s189, 4
        %s191 = scalar_lea.vmem [#allocation2], %s190
        %p192 = pneg %p42
        %p193 = pneg %p39
        %p194 = pneg %p63
        %p195 = pneg %p60
        %p196 = pneg %p84
        %p197 = pneg %p81
        %p198 = pneg %p110
        %p199 = pneg %p107
        %s200 = sand.u32 %s97, 1
        %s201 = scalar_lea.sflag [#allocation4], %s200
        %s202 = sand.u32 %s97, 1
        %s203 = smul.addr %s202, 4
        %s204 = scalar_lea.vmem [#allocation7], %s203
        %v205 = vld [vmem:[%s176] sm:$0xf]
        %vm206 = vcmask 1043456
        %v207 = vsel %vm206, %v205, 0.0
        %v208 = vrot.slane %v207, 4
        %v209 = vadd.f32 %v207, %v208
        %v210 = vrot.slane %v209, 2
        %v211 = vadd.f32 %v209, %v210
        %v212 = vrot.slane %v211, 1
        %v213 = vadd.f32 %v211, %v212
        %215 = vrot.lane.b32.xlu0 %v213, 96
        %v216 = vpop.permute.xlu0 %215
        %v218 = vadd.f32 %v213, %v216
        %219 = vrot.lane.b32.xlu0 %v213, 64
        %v220 = vpop.permute.xlu0 %219
        %v222 = vadd.f32 %v218, %v220
        %223 = vrot.lane.b32.xlu0 %v213, 32
        %v224 = vpop.permute.xlu0 %223
        %v226 = vadd.f32 %v222, %v224
        %v227 = vmul.f32 %v226, 0.0625
        %v228 = vld [vmem:[#allocation5] sm:$0xff]
        %v229 = vld [vmem:[#allocation5 + $0x8] sm:$0xff]
        %v230 = vld [vmem:[#allocation5 + $0x10] sm:$0xff]
        %v231 = vld [vmem:[#allocation5 + $0x18] sm:$0xff]
        %v232 = vld [vmem:[%s2] sm:$0x1]
        %vm233 = vcmask 261120
        %v235 = vsel %vm233, %v227, 0
        %237 = vmatpush.msra.mxu0 0.0
        %238 = vmatpush.msra.mxu0 0.0
        %239 = vmatpush.msra.mxu0 0.0
        %240 = vmatpush.msra.mxu0 0.0
        %241 = vmatpush.msra.mxu0 0.0
        %242 = vmatpush.msra.mxu0 0.0
        %243 = vmatpush.msra.mxu0 0.0
        %244 = vmatpush.msra.mxu0 0.0
        %245 = vmatpush.msra.mxu0 0.0
        %246 = vmatpush.msra.mxu0 0.0
        %247 = vmatpush.msra.mxu0 0.0
        %248 = vmatpush.msra.mxu0 0.0
        %249 = vmatpush.msra.mxu0 %v231
        %250 = vmatpush.msra.mxu0 %v230
        %251 = vmatpush.msra.mxu0 %v229
        %252 = vmatpush.msra.mxu0 %v228
        %253 = vmatmul.f32.gmra.mxu0 %v235
        %v254 = vpop.f32.mrf.mxu0
        %v255 = vadd.f32 %v232, %v254
        %256 = vdwg.mxu0
        %v257 = vmul.f32 %v255, 0.5
        %259 = vrot.lane.b32.xlu0 %v257, 32
        %v260 = vpop.permute.xlu0 %259
        %262 = vrot.lane.b32.xlu0 %v257, 64
        %v263 = vpop.permute.xlu0 %262
        %265 = vrot.lane.b32.xlu0 %v257, 96
        %v266 = vpop.permute.xlu0 %265
        %v268 = vsel %vm233, %v257, %v260
        %vm269 = vcmask 523264
        %v270 = vsel %vm269, %v268, %v263
        %vm271 = vcmask 785408
        %v272 = vsel %vm271, %v270, %v266
        %v273 = vmul.f32 %v205, 0.5
        %v274 = vperm.slane %v272, 0
        %v275 = vadd.f32 %v273, %v274
        %276 = vst [vmem:[%s204] sm:$0xf] %v275
        %s277 = sand.u32 %s97, 1
        %s278 = scalar_lea.sflag [#allocation4], %s277
        %s279 = sand.u32 %s97, 1
        %s280 = smul.addr %s279, 4
        %s281 = scalar_lea.vmem [#allocation7], %s280
        // Predicated region
        $region41: #{tpu_custom_call.1} parent=31 // pred_check
          %p282 = pneg %p107
        $region42: #{tpu_custom_call.1} parent=31 // pred_check_branch
          %284 = sbr.rel (%p282) target = $region44
        $region43: #{tpu_custom_call.1} parent=31 // pred_region
          %286 = vsyncadd %s278, 0
          %s287 = smul.addr %s21, 4
          %s288 = scalar_lea.hbm %s3, %s287
          %s290 = sshll.u32 %s281, 4
          %s291 = int_to_ptr.vmem [resolvable:$true] %s290
          %s292 = sshll.u32 %s288, 4
          %s293 = int_to_ptr.hbm [resolvable:$true] %s292
          %295 = dma.vmem_to_hbm [thread:$0]  %s291, 64, %s293, %s278
        $region44: #{tpu_custom_call.1} parent=31 // pred_fallthru
          _
      $region32: #{tpu_custom_call.1} parent=5 // pred_fallthru
        _
      %p296 = scmp.le.s32.totalorder 2, %s16
      // Predicated region
      $region45: #{tpu_custom_call.1} parent=5 // pred_check
        %p297 = pneg %p296
      $region46: #{tpu_custom_call.1} parent=5 // pred_check_branch
        %299 = sbr.rel (%p297) target = $region48
      $region47: #{tpu_custom_call.1} parent=5 // pred_region
        %s300 = ssub.s32 %s16, 2
        // Predicated region
        $region49: #{tpu_custom_call.1} parent=47 // pred_check
          %p301 = pneg %p113
        $region50: #{tpu_custom_call.1} parent=47 // pred_check_branch
          %303 = sbr.rel (%p301) target = $region52
        $region51: #{tpu_custom_call.1} parent=47 // pred_region
          %s304 = sand.u32 %s98, 1
          %s305 = scalar_lea.sflag [#allocation4], %s304
          %s306 = sand.u32 %s98, 1
          %s307 = smul.addr %s306, 4
          %s308 = scalar_lea.vmem [#allocation7], %s307
          %310 = dma.done %s305, 64
        $region52: #{tpu_custom_call.1} parent=47 // pred_fallthru
          _
      $region48: #{tpu_custom_call.1} parent=5 // pred_fallthru
        _
    $region6: #{tpu_custom_call.1} parent=1 // loop_footer
      %s20 = sadd.s32 1, %s16
    $region7: #{tpu_custom_call.1} parent=1 // loop_footer_branch
      %15 = sbr.rel target = $region3
    $region8: #{tpu_custom_call.1} parent=1 // loop_exit
      _
    %311 = vsyncpa [#allocation3], 1
    %s312 = scalar_lea.sflag [#allocation3], 1
    %313 = vsyncpa %s312, 1
    %314 = vsyncpa [#allocation6], 1
    %315 = vsyncpa [#allocation4], 1
    %s316 = scalar_lea.sflag [#allocation4], 1
    %317 = vsyncpa %s316, 1

</llo_original>
